<compile_context>
chip_gen: v5e
topology: v5e:2x2
jax: 0.10.0
libtpu: 0.0.40
codegen_flags: <defaults>
</compile_context>

<pallas_src>
import functools
import math

import jax
import jax.numpy as jnp
from jax import lax
from jax.experimental import pallas as pl
from jax.experimental.pallas import tpu as pltpu


def _round_up(x, m):
    return -(-x // m) * m


def _cdiv(a, b):
    return -(-a // b)


def _sublane(dtype):
    # Sublane packing granularity: 8 for 4-byte, 16 for 2-byte, 32 for 1-byte.
    return 32 // jnp.dtype(dtype).itemsize


def _choose_tile(dim, max_tile, gran, min_blocks=1):
    """Pick (tile, padded_dim, n_blocks) minimizing dead padding.

    A single full-extent block is exempt from the (sublane, 128) granularity
    rule, so when the whole dim fits in one tile we use it verbatim (zero pad).
    """
    n_blocks = max(min_blocks, _cdiv(dim, max_tile))
    if n_blocks == 1:
        return dim, dim, 1
    tile = _round_up(_cdiv(dim, n_blocks), gran)
    return tile, n_blocks * tile, n_blocks


def _nt_dot(x_tile, w_tile):
    # (tm, tk) x (tn, tk) -> (tm, tn): contract the LAST dims of both operands,
    # i.e. x @ w.T, so the weight stays in its native (out, in) layout and no
    # wrapper-side transpose/copy of the weight is needed.
    return lax.dot_general(
        x_tile, w_tile,
        dimension_numbers=(((1,), (1,)), ((), ())),
        preferred_element_type=jnp.float32,
    )


def _make_kernel_single_k(has_bias):
    """Fast path: K fits in one block. 2-D grid (i, j), no scratch."""

    def kernel(*refs):
        if has_bias:
            x_ref, w_ref, b_ref, o_ref = refs
        else:
            x_ref, w_ref, o_ref = refs
            b_ref = None
        acc = _nt_dot(x_ref[...], w_ref[...])
        if b_ref is not None:
            acc = acc + b_ref[...]
        o_ref[...] = acc.astype(o_ref.dtype)

    return kernel


def _make_kernel_tiled_k(has_bias):
    """General path: 3-D grid (i, j, k), k innermost ('arbitrary'), f32 acc."""

    def kernel(*refs):
        if has_bias:
            x_ref, w_ref, b_ref, o_ref, acc_ref = refs
        else:
            x_ref, w_ref, o_ref, acc_ref = refs
            b_ref = None
        k = pl.program_id(2)
        part = _nt_dot(x_ref[...], w_ref[...])

        @pl.when(k == 0)
        def _():
            acc_ref[...] = part  # assign on first step: no zero-fill store

        @pl.when(k != 0)
        def _():
            acc_ref[...] += part

        @pl.when(k == pl.num_programs(2) - 1)
        def _():
            out = acc_ref[...]
            if b_ref is not None:
                out = out + b_ref[...]
            o_ref[...] = out.astype(o_ref.dtype)

    return kernel


@functools.partial(jax.jit, static_argnames=("tile_m", "tile_n", "tile_k"))
def linear_pallas(x, weight, bias=None, *, tile_m=512, tile_n=512, tile_k=1024):
    """y = x @ weight.T + bias, with x of shape (*, in_features)."""
    *lead, K = x.shape
    N, K_w = weight.shape
    assert K_w == K, "weight must be (out_features, in_features)"

    m = math.prod(lead) if lead else 1
    x2 = x.reshape(m, K)

    # ---- adaptive tile selection (dtype-aware granularity) ----------------
    tm, m_pad, grid_m = _choose_tile(m, tile_m, _sublane(x.dtype))

    # v7x has 2 TensorCores/chip: a 'parallel' axis needs >=2 blocks for both
    # cores to get work.  When M yields only one block, split N instead (each
    # core then streams a disjoint half of the weight).  Only do it when it
    # does not introduce meaningful padding.
    min_n_blocks = 2 if (grid_m == 1 and N >= 256 and N % 256 == 0) else 1
    tn, n_pad, grid_n = _choose_tile(N, tile_n, 128, min_blocks=min_n_blocks)

    tk, k_pad, grid_k = _choose_tile(K, tile_k, 128)

    # ---- pad only when the chosen tiling actually requires it -------------
    if m_pad != m or k_pad != K:
        x2 = jnp.pad(x2, ((0, m_pad - m), (0, k_pad - K)))
    w2 = weight
    if n_pad != N or k_pad != K:
        w2 = jnp.pad(w2, ((0, n_pad - N), (0, k_pad - K)))

    itemsize = jnp.dtype(x.dtype).itemsize
    cost = pl.CostEstimate(
        flops=2 * m * N * K,
        transcendentals=0,
        bytes_accessed=itemsize * (m * K + N * K + m * N),
    )

    has_bias = bias is not None
    operands = [x2, w2]
    if has_bias:
        b2 = bias.reshape(1, N)
        if n_pad != N:
            b2 = jnp.pad(b2, ((0, 0), (0, n_pad - N)))
        operands.append(b2)

    out_shape = jax.ShapeDtypeStruct((m_pad, n_pad), x.dtype)

    # TODO(synk): sweep pipeline_mode=pl.Buffered(3) on the weight BlockSpec for
    # small-M weight-streaming shapes (latency-bound); left at the default here.
    if grid_k == 1:
        grid = (grid_m, grid_n)
        in_specs = [
            pl.BlockSpec((tm, tk), lambda i, j: (i, 0)),
            pl.BlockSpec((tn, tk), lambda i, j: (j, 0)),
        ]
        if has_bias:
            in_specs.append(pl.BlockSpec((1, tn), lambda i, j: (0, j)))
        o_spec = pl.BlockSpec((tm, tn), lambda i, j: (i, j))
        cp = pltpu.CompilerParams(
            dimension_semantics=("parallel", "parallel"),
            vmem_limit_bytes=32 * 1024 * 1024,
        )
        y2 = pl.pallas_call(
            _make_kernel_single_k(has_bias),
            out_shape=out_shape,
            grid=grid,
            in_specs=in_specs,
            out_specs=o_spec,
            compiler_params=cp,
            cost_estimate=cost,
        )(*operands)
    else:
        grid = (grid_m, grid_n, grid_k)
        in_specs = [
            pl.BlockSpec((tm, tk), lambda i, j, k: (i, k)),
            pl.BlockSpec((tn, tk), lambda i, j, k: (j, k)),
        ]
        if has_bias:
            in_specs.append(pl.BlockSpec((1, tn), lambda i, j, k: (0, j)))
        o_spec = pl.BlockSpec((tm, tn), lambda i, j, k: (i, j))
        cp = pltpu.CompilerParams(
            dimension_semantics=("parallel", "parallel", "arbitrary"),
            vmem_limit_bytes=32 * 1024 * 1024,
        )
        y2 = pl.pallas_call(
            _make_kernel_tiled_k(has_bias),
            out_shape=out_shape,
            grid=grid,
            in_specs=in_specs,
            out_specs=o_spec,
            scratch_shapes=[pltpu.VMEM((tm, tn), jnp.float32)],
            compiler_params=cp,
            cost_estimate=cost,
        )(*operands)

    if m_pad != m or n_pad != N:
        y2 = y2[:m, :N]
    return y2.reshape(*lead, N)


def init_linear_params(key, in_features, out_features, bias=True, dtype=jnp.float32):
    """Deterministic init matching the PyTorch module: U(-1/sqrt(in), 1/sqrt(in))."""
    rootn = 1.0 / jnp.sqrt(jnp.asarray(in_features, dtype=jnp.float32))
    kw, kb = jax.random.split(key)
    weight = jax.random.uniform(
        kw, (out_features, in_features), dtype=dtype, minval=-rootn, maxval=rootn
    )
    b = (
        jax.random.uniform(kb, (out_features,), dtype=dtype, minval=-rootn, maxval=rootn)
        if bias
        else None
    )
    return weight, b


if __name__ == "__main__":
    key = jax.random.PRNGKey(0)
    k_x, k_p, k_x2, k_p2 = jax.random.split(key, 4)
    HI = jax.lax.Precision.HIGHEST

    # Small shapes consistent with the module: x is (*, in_features).
    batch, seq, in_features, out_features = 2, 8, 32, 64
    x = jax.random.normal(k_x, (batch, seq, in_features), dtype=jnp.float32)
    weight, bias = init_linear_params(k_p, in_features, out_features, bias=True)

    y = jax.block_until_ready(linear_pallas(x, weight, bias))
    y_ref = jnp.einsum("...i,oi->...o", x, weight, precision=HI) + bias
    assert y.shape == (batch, seq, out_features)
    assert jnp.allclose(y, y_ref, atol=1e-5, rtol=1e-5)

    # No-bias path.
    y_nb = jax.block_until_ready(linear_pallas(x, weight, None))
    y_nb_ref = jnp.einsum("...i,oi->...o", x, weight, precision=HI)
    assert jnp.allclose(y_nb, y_nb_ref, atol=1e-5, rtol=1e-5)

    # Exercise the K-tiled accumulator path (small tile overrides, tiny shapes).
    m2, k2, n2 = 64, 256, 256
    x_b = jax.random.normal(k_x2, (m2, k2), dtype=jnp.float32)
    w_b, b_b = init_linear_params(k_p2, k2, n2, bias=True)
    y_b = jax.block_until_ready(
        linear_pallas(x_b, w_b, b_b, tile_m=32, tile_n=128, tile_k=128)
    )
    y_b_ref = jnp.matmul(x_b, w_b.T, precision=HI) + b_b
    assert jnp.allclose(y_b, y_b_ref, atol=1e-4, rtol=1e-4)

    print("KERNEL_OK")
</pallas_src>

<mosaic_0001>
module attributes {stable_mosaic.version = 11 : i64} {
  func.func @kernel(%arg0: i32, %arg1: i32, %arg2: memref<16x32xf32, #tpu.memory_space<vmem>>, %arg3: memref<64x32xf32, #tpu.memory_space<vmem>>, %arg4: memref<1x64xf32, #tpu.memory_space<vmem>>, %arg5: memref<16x64xf32, #tpu.memory_space<vmem>>) attributes {dimension_semantics = [#tpu.dimension_semantics<parallel>, #tpu.dimension_semantics<parallel>], iteration_bounds = array<i64: 1, 1>, scalar_prefetch = 0 : i64, scratch_operands = 0 : i64, tpu.core_type = #tpu.core_type<tc>, window_params = [{transform_indices = @transform_0, window_bounds = array<i64: 16, 32>}, {transform_indices = @transform_1, window_bounds = array<i64: 64, 32>}, {transform_indices = @transform_2, window_bounds = array<i64: 1, 64>}, {transform_indices = @transform_3, window_bounds = array<i64: 16, 64>}]} {
    %c0 = arith.constant 0 : index
    %c0_0 = arith.constant 0 : index
    %0 = vector.load %arg2[%c0, %c0_0] : memref<16x32xf32, #tpu.memory_space<vmem>>, vector<16x32xf32>
    %c0_1 = arith.constant 0 : index
    %c0_2 = arith.constant 0 : index
    %1 = vector.load %arg3[%c0_1, %c0_2] : memref<64x32xf32, #tpu.memory_space<vmem>>, vector<64x32xf32>
    %cst = arith.constant dense<0.000000e+00> : vector<16x64xf32>
    %2 = tpu.matmul %0, %1, %cst {dimension_numbers = #tpu.dot_dimension_numbers<[1], [1], [0], [0], [0, 0, 1, 0], [], []>} : vector<16x32xf32>, vector<64x32xf32>, vector<16x64xf32> -> vector<16x64xf32>
    %c0_3 = arith.constant 0 : index
    %c0_4 = arith.constant 0 : index
    %3 = vector.load %arg4[%c0_3, %c0_4] : memref<1x64xf32, #tpu.memory_space<vmem>>, vector<1x64xf32>
    %4 = vector.broadcast %3 : vector<1x64xf32> to vector<16x64xf32>
    %5 = arith.addf %2, %4 : vector<16x64xf32>
    %c0_5 = arith.constant 0 : index
    %c0_6 = arith.constant 0 : index
    %6 = vector.load %arg5[%c0_5, %c0_6] : memref<16x64xf32, #tpu.memory_space<vmem>>, vector<16x64xf32>
    tpu.vector_store %arg5[%c0_5, %c0_6], %5 {strides = array<i32>} : memref<16x64xf32, #tpu.memory_space<vmem>>, vector<16x64xf32>,
    return
  }
  func.func @transform_0(%arg0: i32, %arg1: i32) -> (i32, i32) {
    %c0_i32 = arith.constant 0 : i32
    %c0_i32_0 = arith.constant 0 : i32
    return %arg0, %c0_i32 : i32, i32
  }
  func.func @transform_1(%arg0: i32, %arg1: i32) -> (i32, i32) {
    %c0_i32 = arith.constant 0 : i32
    %c0_i32_0 = arith.constant 0 : i32
    return %arg1, %c0_i32 : i32, i32
  }
  func.func @transform_2(%arg0: i32, %arg1: i32) -> (i32, i32) {
    %c0_i32 = arith.constant 0 : i32
    %c0_i32_0 = arith.constant 0 : i32
    return %c0_i32, %arg1 : i32, i32
  }
  func.func @transform_3(%arg0: i32, %arg1: i32) -> (i32, i32) {
    %c0_i32 = arith.constant 0 : i32
    return %arg0, %arg1 : i32, i32
  }
}

</mosaic_0001>

<llo_original>
// kernel: linear_pallas.1
$region0: #{linear_pallas.1}
  #allocation0 [shape = 'u32[]', space=smem, size = 0x4, offset = 0x4, fixed_abs, tag = 'smem constant byte address 0x4 - core index']
  #allocation1 [shape = 'u32[72,128]{1,0:T(1,128)}', space=vmem, size = 0x9000, scoped, tag = 'internal scratch']
  %s0 = inlined_call_operand.vmem [shape: f32[16,32], index: 0, kind: input, shape index: {}]
  %s1 = inlined_call_operand.vmem [shape: f32[64,32], index: 1, kind: input, shape index: {}]
  %s2 = inlined_call_operand.vmem [shape: f32[1,64], index: 2, kind: input, shape index: {}]
  %s3 = inlined_call_operand.hbm [shape: f32[16,64], index: 3, kind: output, shape index: {}]
  %s4 = sld [smem:[#allocation0]]
  $region22: #{linear_pallas.1} parent=0
    _
  %s6 = ssub.s32 1, %s4
  %s7 = scalar_select 0, %s6, %s4
  $region1: #{linear_pallas.1} parent=0
    #allocation2 [shape = 'u8[8192]{0}', space=vmem, size = 0x2000, scoped, tag = 'output window, operand 0, single buffered']
    #allocation3 [shape = 's32[1]{0}', space=sflag, size = 0x4, scoped, tag = 'scoped memory for linear_pallas.1']
    %8 = vsyncpa [#allocation3], 0
    // Predicated region
    $region2: #{linear_pallas.1} parent=1 // pred_check
      _
    $region3: #{linear_pallas.1} parent=1 // pred_check_branch
      %10 = sbr.rel (0) target = $region5
    $region4: #{linear_pallas.1} parent=1 // pred_region
      _
    $region5: #{linear_pallas.1} parent=1 // pred_fallthru
      _
    // Predicated region
    $region6: #{linear_pallas.1} parent=1 // pred_check
      _
    $region7: #{linear_pallas.1} parent=1 // pred_check_branch
      %12 = sbr.rel (0) target = $region9
    $region8: #{linear_pallas.1} parent=1 // pred_region
      _
    $region9: #{linear_pallas.1} parent=1 // pred_fallthru
      _
    // Predicated region
    $region10: #{linear_pallas.1} parent=1 // pred_check
      _
    $region11: #{linear_pallas.1} parent=1 // pred_check_branch
      %14 = sbr.rel (0) target = $region13
    $region12: #{linear_pallas.1} parent=1 // pred_region
      _
    $region13: #{linear_pallas.1} parent=1 // pred_fallthru
      _
    %v15 = vld [vmem:[%s0] sm:$0xff]
    %v16 = vld [vmem:[%s0 + $0x8] sm:$0xff]
    %v17 = vld [vmem:[%s1] sm:$0xff]
    %v18 = vld [vmem:[%s1 + $0x8] sm:$0xff]
    %v19 = vld [vmem:[%s1 + $0x10] sm:$0xff]
    %v20 = vld [vmem:[%s1 + $0x18] sm:$0xff]
    %v21 = vld [vmem:[%s1 + $0x20] sm:$0xff]
    %v22 = vld [vmem:[%s1 + $0x28] sm:$0xff]
    %v23 = vld [vmem:[%s1 + $0x30] sm:$0xff]
    %v24 = vld [vmem:[%s1 + $0x38] sm:$0xff]
    %v25 = vld [vmem:[%s2] sm:$0x1]
    %v27 = vperm.slane %v25, 0
    %vm29 = vcmask 261120
    %v31 = vsel %vm29, %v15, 0
    %v34 = vsel %vm29, %v16, 0
    %v37 = vsel %vm29, %v17, 0
    %v40 = vsel %vm29, %v18, 0
    %v43 = vsel %vm29, %v19, 0
    %v46 = vsel %vm29, %v20, 0
    %v49 = vsel %vm29, %v21, 0
    %v52 = vsel %vm29, %v22, 0
    %v55 = vsel %vm29, %v23, 0
    %v58 = vsel %vm29, %v24, 0
    %60 = vmatpush.xpose.msra.mxu0 0.0
    %61 = vmatpush.xpose.msra.mxu0 0.0
    %62 = vmatpush.xpose.msra.mxu0 0.0
    %63 = vmatpush.xpose.msra.mxu0 0.0
    %64 = vmatpush.xpose.msra.mxu0 0.0
    %65 = vmatpush.xpose.msra.mxu0 0.0
    %66 = vmatpush.xpose.msra.mxu0 0.0
    %67 = vmatpush.xpose.msra.mxu0 0.0
    %68 = vmatpush.xpose.msra.mxu0 %v58
    %69 = vmatpush.xpose.msra.mxu0 %v55
    %70 = vmatpush.xpose.msra.mxu0 %v52
    %71 = vmatpush.xpose.msra.mxu0 %v49
    %72 = vmatpush.xpose.msra.mxu0 %v46
    %73 = vmatpush.xpose.msra.mxu0 %v43
    %74 = vmatpush.xpose.msra.mxu0 %v40
    %75 = vmatpush.xpose.msra.mxu0 %v37
    %76 = vmatmul.f32.gmra.mxu0 %v31
    %v77 = vpop.f32.mrf.mxu0
    %v78 = vadd.f32 %v27, %v77
    %79 = vmatmul.f32.gmra.mxu0 %v34
    %v80 = vpop.f32.mrf.mxu0
    %v81 = vadd.f32 %v27, %v80
    %82 = vdwg.mxu0
    %vm83 = vcmask 523264
    %84 = vst.msk [vmem:[#allocation2] sm:$0xff] %vm83, %v78
    %85 = vst.msk [vmem:[#allocation2 + $0x8] sm:$0xff] %vm83, %v81
    // Predicated region
    $region14: #{linear_pallas.1} parent=1 // pred_check
      _
    $region15: #{linear_pallas.1} parent=1 // pred_check_branch
      %87 = sbr.rel (0) target = $region17
    $region16: #{linear_pallas.1} parent=1 // pred_region
      %89 = vsyncadd [#allocation3], 0
      %s90 = sshll.u32 [#allocation2], 4
      %s91 = int_to_ptr.vmem [resolvable:$true] %s90
      %s92 = sshll.u32 %s3, 4
      %s93 = int_to_ptr.hbm [resolvable:$true] %s92
      %98 = dma.vmem_to_hbm [thread:$0]  %s91, 256, %s93, [#allocation3], 128, 128, 8
    $region17: #{linear_pallas.1} parent=1 // pred_fallthru
      _
    // Predicated region
    $region18: #{linear_pallas.1} parent=1 // pred_check
      _
    $region19: #{linear_pallas.1} parent=1 // pred_check_branch
      %100 = sbr.rel (0) target = $region21
    $region20: #{linear_pallas.1} parent=1 // pred_region
      %102 = dma.done [#allocation3], 256
    $region21: #{linear_pallas.1} parent=1 // pred_fallthru
      _
    %103 = vsyncpa [#allocation3], 1

</llo_original>
